<compile_context>
chip_gen: v7x
topology: tpu7x:2x2x1
jax: 0.10.0
libtpu: 0.0.40
codegen_flags: <defaults>
</compile_context>

<pallas_src>
import functools

import jax
import jax.numpy as jnp
import numpy as np
from jax.experimental import pallas as pl
from jax.experimental.pallas import tpu as pltpu

EPS = 1e-5
C_LANES = 128                     # pad channel dims to a full lane width
TM = 256                          # row tile over M = N*Ho*Wo (multiple of 8);
                                  # raise to 512-2048 at real ResNet sizes
VMEM_LIMIT = 32 * 1024 * 1024     # explicit scoped-VMEM budget (fits v5e/v6e/v7x)


def _round_up(x, m):
    return (x + m - 1) // m * m


# -----------------------------------------------------------------------------
# Pallas kernels
# -----------------------------------------------------------------------------
def _conv_stats_kernel(taps_ref, w_ref, y_ref, stats_ref):
    """Pass 1: one K=9*Cin MXU matmul per row tile + per-tile BN partial sums.

    taps_ref : (tm, 9*Cin)  bf16  im2col taps for this row tile
    w_ref    : (9*Cin, Cp)  bf16  packed conv weights (resident across tiles)
    y_ref    : (tm, Cp)     f32   raw (pre-BN) conv output tile
    stats_ref: (8, Cp)      f32   this tile's partials: row 0 = sum, row 1 = sumsq
    """
    y = jnp.dot(taps_ref[...], w_ref[...], preferred_element_type=jnp.float32)
    y_ref[...] = y
    s1 = jnp.sum(y, axis=0, keepdims=True)
    s2 = jnp.sum(y * y, axis=0, keepdims=True)
    row = jax.lax.broadcasted_iota(jnp.int32, stats_ref.shape, 0)
    stats_ref[...] = jnp.where(row == 0, s1, 0.0) + jnp.where(row == 1, s2, 0.0)


def _scale_shift(stats_ref, gamma_ref, beta_ref, inv_m):
    """Fold training-mode BN into per-channel scale/shift.

    Conv biases are dropped entirely: BN subtracts the batch mean, which
    cancels a per-channel constant bias exactly.
    """
    mean = stats_ref[0:1, :] * inv_m
    var = stats_ref[1:2, :] * inv_m - mean * mean
    scale = gamma_ref[...] * jax.lax.rsqrt(var + EPS)
    shift = beta_ref[...] - mean * scale
    return scale, shift


def _bn_relu_kernel(y_ref, stats_ref, gamma_ref, beta_ref, o_ref, *, inv_m):
    scale, shift = _scale_shift(stats_ref, gamma_ref, beta_ref, inv_m)
    o_ref[...] = jnp.maximum(y_ref[...] * scale + shift, 0.0).astype(o_ref.dtype)


def _bn_add_relu_kernel(y_ref, stats_ref, gamma_ref, beta_ref, skip_ref, o_ref,
                        *, inv_m):
    scale, shift = _scale_shift(stats_ref, gamma_ref, beta_ref, inv_m)
    y = y_ref[...] * scale + shift + skip_ref[...]
    o_ref[...] = jnp.maximum(y, 0.0).astype(o_ref.dtype)


def _bn_proj_add_relu_kernel(y_ref, stats_ref, gamma_ref, beta_ref, skip_ref,
                             w3_ref, b3_ref, o_ref, *, inv_m):
    scale, shift = _scale_shift(stats_ref, gamma_ref, beta_ref, inv_m)
    proj = jnp.dot(skip_ref[...], w3_ref[...],
                   preferred_element_type=jnp.float32) + b3_ref[...]
    y = y_ref[...] * scale + shift + proj
    o_ref[...] = jnp.maximum(y, 0.0).astype(o_ref.dtype)


# -----------------------------------------------------------------------------
# pallas_call plumbing
# -----------------------------------------------------------------------------
def _tiled(shape, tm):
    rest = len(shape) - 1
    return pl.BlockSpec((tm,) + tuple(shape[1:]),
                        lambda i, _r=rest: (i,) + (0,) * _r)


def _resident(shape):
    nd = len(shape)
    return pl.BlockSpec(tuple(shape), lambda i, _nd=nd: (0,) * _nd)


def _conv_pass1(taps, w, tm):
    """Conv as one big matmul per row tile; emits per-tile BN partial sums."""
    mp, _ = taps.shape
    cp = w.shape[1]
    nt = mp // tm
    y_raw, stats_part = pl.pallas_call(
        _conv_stats_kernel,
        out_shape=(jax.ShapeDtypeStruct((mp, cp), jnp.float32),
                   jax.ShapeDtypeStruct((nt * 8, cp), jnp.float32)),
        grid=(nt,),
        in_specs=[_tiled(taps.shape, tm), _resident(w.shape)],
        out_specs=(_tiled((mp, cp), tm),
                   pl.BlockSpec((8, cp), lambda i: (i, 0))),
        compiler_params=pltpu.CompilerParams(
            dimension_semantics=("parallel",),
            vmem_limit_bytes=VMEM_LIMIT),
    )(taps, w)
    # Tiny cross-tile reduction of the per-tile partials -> (8, Cp).
    stats = jnp.sum(stats_part.reshape(nt, 8, cp), axis=0)
    return y_raw, stats


def _pass2(kernel, inv_m, args_specs, out_shape, out_dtype, tm):
    arrays = [a for a, _ in args_specs]
    specs = [s for _, s in args_specs]
    return pl.pallas_call(
        functools.partial(kernel, inv_m=inv_m),
        out_shape=jax.ShapeDtypeStruct(out_shape, out_dtype),
        grid=(out_shape[0] // tm,),
        in_specs=specs,
        out_specs=_tiled(out_shape, tm),
        compiler_params=pltpu.CompilerParams(
            dimension_semantics=("parallel",),   # M tiles shard across v7x's 2 TCs
            vmem_limit_bytes=VMEM_LIMIT),
    )(*arrays)


# -----------------------------------------------------------------------------
# Wrapper-side glue (plain JAX): padding, im2col taps, weight repacking, layout.
# -----------------------------------------------------------------------------
def _im2col(x_pad, ho, wo, stride):
    """(N, Hp, Wp, C) spatially padded NHWC -> (N*ho*wo, 9*C), tap-major kh*3+kw."""
    n, _, _, c = x_pad.shape
    cols = []
    for kh in range(3):
        for kw in range(3):
            sl = x_pad[:, kh:kh + (ho - 1) * stride + 1:stride,
                          kw:kw + (wo - 1) * stride + 1:stride, :]
            cols.append(sl.reshape(n * ho * wo, c))
    return jnp.concatenate(cols, axis=-1)


def _pack_w3x3(w_oihw, cin_pad, cout_pad):
    """(Cout, Cin, 3, 3) -> (9*cin_pad, cout_pad); K index = (kh*3+kw)*cin_pad + ci."""
    cout, cin = w_oihw.shape[0], w_oihw.shape[1]
    w = jnp.transpose(w_oihw, (2, 3, 1, 0))                       # (3,3,Cin,Cout)
    w = jnp.pad(w, ((0, 0), (0, 0), (0, cin_pad - cin), (0, cout_pad - cout)))
    return w.reshape(9 * cin_pad, cout_pad)


def _pad2d(x, rows=None, cols=None):
    pr = 0 if rows is None else rows - x.shape[0]
    pc = 0 if cols is None else cols - x.shape[1]
    return jnp.pad(x, ((0, pr), (0, pc))) if (pr or pc) else x


def _row_pad(v, cpad):
    return _pad2d(v.reshape(1, -1), cols=cpad)


def residual_forward(x_nchw, params, use_1x1conv, stride):
    x = jnp.transpose(x_nchw, (0, 2, 3, 1)).astype(jnp.float32)   # NHWC
    n, h, w, cin = x.shape
    cout = params["w1"].shape[0]
    ho = (h - 1) // stride + 1
    wo = (w - 1) // stride + 1
    m = n * ho * wo
    cp = _round_up(cout, C_LANES)      # lane-dense channel padding (zeros)

    if not use_1x1conv:
        assert cin == cout and stride == 1, (
            "identity skip needs in_channels == out_channels and stride == 1")

    tm = min(TM, _round_up(m, 8))      # row tile (multiple of 8)
    mp = _round_up(m, tm)              # row count padded with zero rows
    inv_m = 1.0 / float(m)             # true BN count; zero pad rows add nothing

    # ---- conv1 (3x3, pad=1, stride) -> bn1 -> relu ---------------------------
    x_sp = jnp.pad(x, ((0, 0), (1, 1), (1, 1), (0, 0)))
    taps1 = _pad2d(_im2col(x_sp, ho, wo, stride), rows=mp).astype(jnp.bfloat16)
    w1p = _pack_w3x3(params["w1"], cin, cp).astype(jnp.bfloat16)
    y1_raw, stats1 = _conv_pass1(taps1, w1p, tm)

    g1 = _row_pad(params["gamma1"], cp)
    b1 = _row_pad(params["beta1"], cp)
    y1 = _pass2(_bn_relu_kernel, inv_m,
                [(y1_raw, _tiled(y1_raw.shape, tm)),
                 (stats1, _resident(stats1.shape)),
                 (g1, _resident(g1.shape)),
                 (b1, _resident(b1.shape))],
                (mp, cp), jnp.bfloat16, tm)

    # ---- conv2 (3x3, pad=1, stride=1) -> bn2 -> (+ skip) -> relu -------------
    y1_sp = jnp.pad(y1[:m].reshape(n, ho, wo, cp),
                    ((0, 0), (1, 1), (1, 1), (0, 0)))
    taps2 = _pad2d(_im2col(y1_sp, ho, wo, 1), rows=mp)            # already bf16
    w2p = _pack_w3x3(params["w2"], cp, cp).astype(jnp.bfloat16)
    y2_raw, stats2 = _conv_pass1(taps2, w2p, tm)

    g2 = _row_pad(params["gamma2"], cp)
    b2 = _row_pad(params["beta2"], cp)

    if use_1x1conv:
        cin_p = _round_up(cin, C_LANES)
        skip_x = x[:, ::stride, ::stride, :].reshape(m, cin)
        skip_x = _pad2d(skip_x, rows=mp, cols=cin_p).astype(jnp.bfloat16)
        w3p = _pad2d(jnp.transpose(params["w3"][:, :, 0, 0], (1, 0)),
                     rows=cin_p, cols=cp).astype(jnp.bfloat16)
        b3p = _row_pad(params["b3"], cp)
        out = _pass2(_bn_proj_add_relu_kernel, inv_m,
                     [(y2_raw, _tiled(y2_raw.shape, tm)),
                      (stats2, _resident(stats2.shape)),
                      (g2, _resident(g2.shape)),
                      (b2, _resident(b2.shape)),
                      (skip_x, _tiled(skip_x.shape, tm)),
                      (w3p, _resident(w3p.shape)),
                      (b3p, _resident(b3p.shape))],
                     (mp, cp), jnp.float32, tm)
    else:
        skip = _pad2d(x.reshape(m, cin), rows=mp, cols=cp)        # f32 identity skip
        out = _pass2(_bn_add_relu_kernel, inv_m,
                     [(y2_raw, _tiled(y2_raw.shape, tm)),
                      (stats2, _resident(stats2.shape)),
                      (g2, _resident(g2.shape)),
                      (b2, _resident(b2.shape)),
                      (skip, _tiled(skip.shape, tm))],
                     (mp, cp), jnp.float32, tm)

    out = out[:m, :cout].reshape(n, ho, wo, cout)
    return jnp.transpose(out, (0, 3, 1, 2))                       # back to NCHW


# -----------------------------------------------------------------------------
# Pure-JAX reference (mirrors the PyTorch forward, training-mode BN, f32).
# -----------------------------------------------------------------------------
def residual_reference(x, params, use_1x1conv, stride):
    def conv(x, w, b, s, pad):
        y = jax.lax.conv_general_dilated(
            x, w, window_strides=(s, s), padding=pad,
            dimension_numbers=("NCHW", "OIHW", "NCHW"))
        return y + b[None, :, None, None]

    def bn(y, gamma, beta):
        mean = jnp.mean(y, axis=(0, 2, 3), keepdims=True)
        var = jnp.mean((y - mean) ** 2, axis=(0, 2, 3), keepdims=True)
        return (gamma[None, :, None, None] * (y - mean) /
                jnp.sqrt(var + EPS) + beta[None, :, None, None])

    y = jax.nn.relu(bn(conv(x, params["w1"], params["b1"], stride,
                            [(1, 1), (1, 1)]),
                       params["gamma1"], params["beta1"]))
    y = bn(conv(y, params["w2"], params["b2"], 1, [(1, 1), (1, 1)]),
           params["gamma2"], params["beta2"])
    if use_1x1conv:
        x = conv(x, params["w3"], params["b3"], stride, [(0, 0), (0, 0)])
    return jax.nn.relu(y + x)


def init_params(key, cin, cout, use_1x1conv):
    ks = jax.random.split(key, 10)
    p = dict(
        # NOTE: b1/b2 exist (as in the PyTorch module) but cancel exactly under
        # training-mode BN; the Pallas path therefore never reads them.
        w1=0.1 * jax.random.normal(ks[0], (cout, cin, 3, 3), jnp.float32),
        b1=0.1 * jax.random.normal(ks[1], (cout,), jnp.float32),
        w2=0.1 * jax.random.normal(ks[2], (cout, cout, 3, 3), jnp.float32),
        b2=0.1 * jax.random.normal(ks[3], (cout,), jnp.float32),
        gamma1=1.0 + 0.1 * jax.random.normal(ks[4], (cout,), jnp.float32),
        beta1=0.1 * jax.random.normal(ks[5], (cout,), jnp.float32),
        gamma2=1.0 + 0.1 * jax.random.normal(ks[6], (cout,), jnp.float32),
        beta2=0.1 * jax.random.normal(ks[7], (cout,), jnp.float32),
    )
    if use_1x1conv:
        p["w3"] = 0.1 * jax.random.normal(ks[8], (cout, cin, 1, 1), jnp.float32)
        p["b3"] = 0.1 * jax.random.normal(ks[9], (cout,), jnp.float32)
    return p


if __name__ == "__main__":
    key = jax.random.PRNGKey(0)
    kx, kp1, kp2 = jax.random.split(key, 3)

    # NCHW input, as in PyTorch.
    x = jax.random.normal(kx, (2, 4, 16, 16), jnp.float32)

    # Tolerance: bf16 MXU operands (f32 accumulation / f32 BN math) vs f32 ref.
    ATOL = RTOL = 3e-2

    # Case 1: projection shortcut (use_1x1conv=True, stride=2) -> (2, 8, 8, 8)
    params = init_params(kp1, 4, 8, True)
    out = jax.block_until_ready(residual_forward(x, params, True, 2))
    ref = residual_reference(x, params, True, 2)
    assert out.shape == ref.shape == (2, 8, 8, 8)
    np.testing.assert_allclose(np.asarray(out), np.asarray(ref),
                               atol=ATOL, rtol=RTOL)

    # Case 2: identity shortcut (use_1x1conv=False, stride=1) -> (2, 4, 16, 16)
    params2 = init_params(kp2, 4, 4, False)
    out2 = jax.block_until_ready(residual_forward(x, params2, False, 1))
    ref2 = residual_reference(x, params2, False, 1)
    assert out2.shape == ref2.shape == (2, 4, 16, 16)
    np.testing.assert_allclose(np.asarray(out2), np.asarray(ref2),
                               atol=ATOL, rtol=RTOL)

    print("KERNEL_OK")
</pallas_src>

<mosaic_0001>
module attributes {stable_mosaic.version = 11 : i64} {
  func.func @_conv_stats_kernel(%arg0: i32, %arg1: memref<128x36xbf16, #tpu.memory_space<vmem>>, %arg2: memref<36x128xbf16, #tpu.memory_space<vmem>>, %arg3: memref<128x128xf32, #tpu.memory_space<vmem>>, %arg4: memref<8x128xf32, #tpu.memory_space<vmem>>) attributes {dimension_semantics = [#tpu.dimension_semantics<parallel>], iteration_bounds = array<i64: 1>, scalar_prefetch = 0 : i64, scratch_operands = 0 : i64, tpu.core_type = #tpu.core_type<tc>, window_params = [{transform_indices = @transform_0, window_bounds = array<i64: 128, 36>}, {pipeline_mode = #tpu.pipeline_mode<synchronous>, transform_indices = @transform_1, window_bounds = array<i64: 36, 128>}, {transform_indices = @transform_2, window_bounds = array<i64: 128, 128>}, {transform_indices = @transform_3, window_bounds = array<i64: 8, 128>}]} {
    %c0 = arith.constant 0 : index
    %c0_0 = arith.constant 0 : index
    %0 = vector.load %arg1[%c0, %c0_0] : memref<128x36xbf16, #tpu.memory_space<vmem>>, vector<128x36xbf16>
    %c0_1 = arith.constant 0 : index
    %c0_2 = arith.constant 0 : index
    %1 = vector.load %arg2[%c0_1, %c0_2] : memref<36x128xbf16, #tpu.memory_space<vmem>>, vector<36x128xbf16>
    %cst = arith.constant dense<0.000000e+00> : vector<128x128xf32>
    %2 = tpu.matmul %0, %1, %cst {dimension_numbers = #tpu.dot_dimension_numbers<[1], [0], [0], [1], [0, 0, 1, 1], [], []>} : vector<128x36xbf16>, vector<36x128xbf16>, vector<128x128xf32> -> vector<128x128xf32>
    %c0_3 = arith.constant 0 : index
    %c0_4 = arith.constant 0 : index
    %3 = vector.load %arg3[%c0_3, %c0_4] : memref<128x128xf32, #tpu.memory_space<vmem>>, vector<128x128xf32>
    tpu.vector_store %arg3[%c0_3, %c0_4], %2 {strides = array<i32>} : memref<128x128xf32, #tpu.memory_space<vmem>>, vector<128x128xf32>,
    %cst_5 = arith.constant dense<0.000000e+00> : vector<128xf32>
    %4 = vector.multi_reduction <add>, %2, %cst_5 [0] : vector<128x128xf32> to vector<128xf32>
    %5 = vector.shape_cast %4 : vector<128xf32> to vector<1x128xf32>
    %6 = arith.mulf %2, %2 : vector<128x128xf32>
    %cst_6 = arith.constant dense<0.000000e+00> : vector<128xf32>
    %7 = vector.multi_reduction <add>, %6, %cst_6 [0] : vector<128x128xf32> to vector<128xf32>
    %8 = vector.shape_cast %7 : vector<128xf32> to vector<1x128xf32>
    %9 = tpu.iota {dimensions = array<i32: 0>} : vector<8x128xi32>
    %c0_i32 = arith.constant 0 : i32
    %10 = vector.broadcast %c0_i32 : i32 to vector<8x128xi32>
    %11 = arith.cmpi eq, %9, %10 : vector<8x128xi32>
    %cst_7 = arith.constant 0.000000e+00 : f32
    %12 = vector.shape_cast %5 : vector<1x128xf32> to vector<1x128xf32>
    %13 = vector.broadcast %12 : vector<1x128xf32> to vector<8x128xf32>
    %14 = vector.broadcast %cst_7 : f32 to vector<8x128xf32>
    %15 = arith.select %11, %13, %14 : vector<8x128xi1>, vector<8x128xf32>
    %c1_i32 = arith.constant 1 : i32
    %16 = vector.broadcast %c1_i32 : i32 to vector<8x128xi32>
    %17 = arith.cmpi eq, %9, %16 : vector<8x128xi32>
    %cst_8 = arith.constant 0.000000e+00 : f32
    %18 = vector.shape_cast %8 : vector<1x128xf32> to vector<1x128xf32>
    %19 = vector.broadcast %18 : vector<1x128xf32> to vector<8x128xf32>
    %20 = vector.broadcast %cst_8 : f32 to vector<8x128xf32>
    %21 = arith.select %17, %19, %20 : vector<8x128xi1>, vector<8x128xf32>
    %22 = arith.addf %15, %21 : vector<8x128xf32>
    %c0_9 = arith.constant 0 : index
    %c0_10 = arith.constant 0 : index
    %23 = vector.load %arg4[%c0_9, %c0_10] : memref<8x128xf32, #tpu.memory_space<vmem>>, vector<8x128xf32>
    tpu.vector_store %arg4[%c0_9, %c0_10], %22 {strides = array<i32>} : memref<8x128xf32, #tpu.memory_space<vmem>>, vector<8x128xf32>,
    return
  }
  func.func @transform_0(%arg0: i32) -> (i32, i32) {
    %c0_i32 = arith.constant 0 : i32
    %c0_i32_0 = arith.constant 0 : i32
    return %arg0, %c0_i32 : i32, i32
  }
  func.func @transform_1(%arg0: i32) -> (i32, i32) {
    %c0_i32 = arith.constant 0 : i32
    %c0_i32_0 = arith.constant 0 : i32
    %c0_i32_1 = arith.constant 0 : i32
    return %c0_i32, %c0_i32_0 : i32, i32
  }
  func.func @transform_2(%arg0: i32) -> (i32, i32) {
    %c0_i32 = arith.constant 0 : i32
    %c0_i32_0 = arith.constant 0 : i32
    return %arg0, %c0_i32 : i32, i32
  }
  func.func @transform_3(%arg0: i32) -> (i32, i32) {
    %c0_i32 = arith.constant 0 : i32
    %c0_i32_0 = arith.constant 0 : i32
    return %arg0, %c0_i32 : i32, i32
  }
}

</mosaic_0001>

<llo_original>
// kernel: tpu_custom_call.1
$region0: #{tpu_custom_call.1}
  #allocation0 [shape = 'u32[]', space=smem, size = 0x4, offset = 0x4, fixed_abs, tag = 'smem constant byte address 0x4 - core index']
  #allocation1 [shape = 'u32[144,128]{1,0:T(1,128)}', space=vmem, size = 0x12000, scoped, tag = 'internal scratch']
  %s0 = inlined_call_operand.vmem [shape: bf16[128,36], index: 0, kind: input, shape index: {}]
  %s1 = inlined_call_operand.vmem [shape: bf16[36,128], index: 1, kind: input, shape index: {}]
  %s2 = inlined_call_operand.hbm [shape: f32[128,128], index: 2, kind: output, shape index: {0}]
  %s3 = inlined_call_operand.hbm [shape: f32[8,128], index: 3, kind: output, shape index: {1}]
  %4 = xla_tuple %s2, %s3
  %s5 = sld [smem:[#allocation0]]
  $region26: #{tpu_custom_call.1} parent=0
    _
  %s7 = ssub.s32 1, %s5
  %s8 = scalar_select 0, %s7, %s5
  $region1: #{tpu_custom_call.1} parent=0
    #allocation2 [shape = 'u8[65536]{0}', space=vmem, size = 0x10000, scoped, tag = 'output window, operand 0, single buffered']
    #allocation3 [shape = 's32[1]{0}', space=sflag, size = 0x4, scoped, tag = 'scoped memory for tpu_custom_call.1']
    #allocation4 [shape = 'u8[4096]{0}', space=vmem, size = 0x1000, scoped, tag = 'output window, operand 1, single buffered']
    #allocation5 [shape = 's32[1]{0}', space=sflag, size = 0x4, scoped, tag = 'scoped memory for tpu_custom_call.1']
    %9 = vsyncpa [#allocation3], 0
    %10 = vsyncpa [#allocation5], 0
    // Predicated region
    $region2: #{tpu_custom_call.1} parent=1 // pred_check
      _
    $region3: #{tpu_custom_call.1} parent=1 // pred_check_branch
      %12 = sbr.rel (0) target = $region5
    $region4: #{tpu_custom_call.1} parent=1 // pred_region
      _
    $region5: #{tpu_custom_call.1} parent=1 // pred_fallthru
      _
    // Predicated region
    $region6: #{tpu_custom_call.1} parent=1 // pred_check
      _
    $region7: #{tpu_custom_call.1} parent=1 // pred_check_branch
      %14 = sbr.rel (0) target = $region9
    $region8: #{tpu_custom_call.1} parent=1 // pred_region
      _
    $region9: #{tpu_custom_call.1} parent=1 // pred_fallthru
      _
    %v16 = vld [vmem:[%s0] sm:$0xf]
    %v17 = vld [vmem:[%s0 + $0x4] sm:$0xf]
    %v18 = vld [vmem:[%s0 + $0x8] sm:$0xf]
    %v19 = vld [vmem:[%s0 + $0xc] sm:$0xf]
    %v20 = vld [vmem:[%s0 + $0x10] sm:$0xf]
    %v21 = vld [vmem:[%s0 + $0x14] sm:$0xf]
    %v22 = vld [vmem:[%s0 + $0x18] sm:$0xf]
    %v23 = vld [vmem:[%s0 + $0x1c] sm:$0xf]
    %v24 = vld [vmem:[%s0 + $0x20] sm:$0xf]
    %v25 = vld [vmem:[%s0 + $0x24] sm:$0xf]
    %v26 = vld [vmem:[%s0 + $0x28] sm:$0xf]
    %v27 = vld [vmem:[%s0 + $0x2c] sm:$0xf]
    %v28 = vld [vmem:[%s0 + $0x30] sm:$0xf]
    %v29 = vld [vmem:[%s0 + $0x34] sm:$0xf]
    %v30 = vld [vmem:[%s0 + $0x38] sm:$0xf]
    %v31 = vld [vmem:[%s0 + $0x3c] sm:$0xf]
    %v32 = vld [vmem:[%s1] sm:$0xf]
    %v33 = vld [vmem:[%s1 + $0x4] sm:$0xf]
    %v34 = vld [vmem:[%s1 + $0x8] sm:$0xf]
    %v35 = vld [vmem:[%s1 + $0xc] sm:$0xf]
    %v36 = vld [vmem:[%s1 + $0x10] sm:$0x3]
    %v53 = vunpack.c.l.b16 %v16
    %v54 = vunpack.c.l.b16 %v17
    %v55 = vunpack.c.l.b16 %v18
    %v56 = vunpack.c.l.b16 %v19
    %v57 = vunpack.c.l.b16 %v20
    %v58 = vunpack.c.l.b16 %v21
    %v59 = vunpack.c.l.b16 %v22
    %v60 = vunpack.c.l.b16 %v23
    %v61 = vunpack.c.l.b16 %v24
    %v62 = vunpack.c.l.b16 %v25
    %v63 = vunpack.c.l.b16 %v26
    %v64 = vunpack.c.l.b16 %v27
    %v65 = vunpack.c.l.b16 %v28
    %v66 = vunpack.c.l.b16 %v29
    %v67 = vunpack.c.l.b16 %v30
    %v68 = vunpack.c.l.b16 %v31
    %v69 = vpack.c.b16 %v54, %v53
    %v70 = vpack.c.b16 %v56, %v55
    %v71 = vpack.c.b16 %v58, %v57
    %v72 = vpack.c.b16 %v60, %v59
    %v73 = vpack.c.b16 %v62, %v61
    %v74 = vpack.c.b16 %v64, %v63
    %v75 = vpack.c.b16 %v66, %v65
    %v76 = vpack.c.b16 %v68, %v67
    %v82 = vunpack.c.l.b16 %v32
    %v83 = vunpack.c.l.b16 %v33
    %v84 = vunpack.c.l.b16 %v34
    %v85 = vunpack.c.l.b16 %v35
    %v86 = vunpack.c.l.b16 %v36
    %v87 = vpack.c.b16 %v83, %v82
    %v88 = vpack.c.b16 %v85, %v84
    %v89 = vpack.c.b16 %v86, %v86
    %vm92 = vcmask 293888
    %v94 = vsel %vm92, %v69, 0
    %v97 = vsel %vm92, %v70, 0
    %v100 = vsel %vm92, %v71, 0
    %v103 = vsel %vm92, %v72, 0
    %v106 = vsel %vm92, %v73, 0
    %v109 = vsel %vm92, %v74, 0
    %v112 = vsel %vm92, %v75, 0
    %v115 = vsel %vm92, %v76, 0
    %vm117 = vcmask 1041408
    %v119 = vsel %vm117, %v89, 0
    %121 = vmatprep.subr.bf16.mxu0 0
    %122 = vmatpush1.bf16.msra.mxu0 %v87
    %123 = vmatprep.subr.bf16.mxu0 0
    %124 = vmatpush1.bf16.msra.mxu0 %v88
    %125 = vmatprep.subr.bf16.mxu0 0
    %126 = vmatpush1.bf16.msra.mxu0 %v119
    %127 = vmatprep.subr.bf16.mxu0 0
    %128 = vmatpush1.bf16.msra.mxu0 0
    %129 = vmatprep.subr.bf16.mxu0 0
    %130 = vmatpush1.bf16.msra.mxu0 0
    %131 = vmatprep.subr.bf16.mxu0 0
    %132 = vmatpush1.bf16.msra.mxu0 0
    %133 = vmatprep.subr.bf16.mxu0 0
    %134 = vmatpush1.bf16.msra.mxu0 0
    %135 = vmatprep.subr.bf16.mxu0 0
    %136 = vmatpush1.bf16.msra.mxu0 0
    %137 = vmatprep.subr.bf16.mxu0 0
    %138 = vmatpush1.bf16.msra.mxu0 0
    %139 = vmatprep.subr.bf16.mxu0 0
    %140 = vmatpush1.bf16.msra.mxu0 0
    %141 = vmatprep.subr.bf16.mxu0 0
    %142 = vmatpush1.bf16.msra.mxu0 0
    %143 = vmatprep.subr.bf16.mxu0 0
    %144 = vmatpush1.bf16.msra.mxu0 0
    %145 = vmatprep.subr.bf16.mxu0 0
    %146 = vmatpush1.bf16.msra.mxu0 0
    %147 = vmatprep.subr.bf16.mxu0 0
    %148 = vmatpush1.bf16.msra.mxu0 0
    %149 = vmatprep.subr.bf16.mxu0 0
    %150 = vmatpush1.bf16.msra.mxu0 0
    %151 = vmatprep.subr.bf16.mxu0 0
    %152 = vmatpush1.bf16.msra.mxu0 0
    %153 = vmatprep.mubr.bf16.mxu0 0
    %154 = vmatmul.mubr.bf16.gmra.mrb[0].mxu0 %v94
    %v155 = vpop.f32.mrb[0].mxu0
    %v156 = vadd.f32 0.0, %v155
    %v157 = vpop.f32.mrb[0].mxu0
    %v158 = vpop.f32.mrb[0].mxu0
    %v159 = vadd.f32 0.0, %v158
    %v160 = vpop.f32.mrb[0].mxu0
    %161 = vmatprep.mubr.bf16.mxu0 0
    %162 = vmatmul.mubr.bf16.gmra.mrb[0].mxu0 %v97
    %v163 = vpop.f32.mrb[0].mxu0
    %v164 = vadd.f32 0.0, %v163
    %v165 = vpop.f32.mrb[0].mxu0
    %v166 = vpop.f32.mrb[0].mxu0
    %v167 = vadd.f32 0.0, %v166
    %v168 = vpop.f32.mrb[0].mxu0
    %169 = vmatprep.mubr.bf16.mxu0 0
    %170 = vmatmul.mubr.bf16.gmra.mrb[0].mxu0 %v100
    %v171 = vpop.f32.mrb[0].mxu0
    %v172 = vadd.f32 0.0, %v171
    %v173 = vpop.f32.mrb[0].mxu0
    %v174 = vpop.f32.mrb[0].mxu0
    %v175 = vadd.f32 0.0, %v174
    %v176 = vpop.f32.mrb[0].mxu0
    %177 = vmatprep.mubr.bf16.mxu0 0
    %178 = vmatmul.mubr.bf16.gmra.mrb[0].mxu0 %v103
    %v179 = vpop.f32.mrb[0].mxu0
    %v180 = vadd.f32 0.0, %v179
    %v181 = vpop.f32.mrb[0].mxu0
    %v182 = vpop.f32.mrb[0].mxu0
    %v183 = vadd.f32 0.0, %v182
    %v184 = vpop.f32.mrb[0].mxu0
    %185 = vmatprep.mubr.bf16.mxu0 0
    %186 = vmatmul.mubr.bf16.gmra.mrb[0].mxu0 %v106
    %v187 = vpop.f32.mrb[0].mxu0
    %v188 = vadd.f32 0.0, %v187
    %v189 = vpop.f32.mrb[0].mxu0
    %v190 = vpop.f32.mrb[0].mxu0
    %v191 = vadd.f32 0.0, %v190
    %v192 = vpop.f32.mrb[0].mxu0
    %193 = vmatprep.mubr.bf16.mxu0 0
    %194 = vmatmul.mubr.bf16.gmra.mrb[0].mxu0 %v109
    %v195 = vpop.f32.mrb[0].mxu0
    %v196 = vadd.f32 0.0, %v195
    %v197 = vpop.f32.mrb[0].mxu0
    %v198 = vpop.f32.mrb[0].mxu0
    %v199 = vadd.f32 0.0, %v198
    %v200 = vpop.f32.mrb[0].mxu0
    %201 = vmatprep.mubr.bf16.mxu0 0
    %202 = vmatmul.mubr.bf16.gmra.mrb[0].mxu0 %v112
    %v203 = vpop.f32.mrb[0].mxu0
    %v204 = vadd.f32 0.0, %v203
    %v205 = vpop.f32.mrb[0].mxu0
    %v206 = vpop.f32.mrb[0].mxu0
    %v207 = vadd.f32 0.0, %v206
    %v208 = vpop.f32.mrb[0].mxu0
    %209 = vmatprep.mubr.bf16.mxu0 0
    %210 = vmatmul.mubr.bf16.gmra.mrb[0].mxu0 %v115
    %v211 = vpop.f32.mrb[0].mxu0
    %v212 = vadd.f32 0.0, %v211
    %v213 = vpop.f32.mrb[0].mxu0
    %v214 = vpop.f32.mrb[0].mxu0
    %v215 = vadd.f32 0.0, %v214
    %v216 = vpop.f32.mrb[0].mxu0
    %217 = vdwg.mxu0
    %218 = vst [vmem:[#allocation2] sm:$0xff] %v156
    %219 = vst [vmem:[#allocation2 + $0x8] sm:$0xff] %v159
    %220 = vst [vmem:[#allocation2 + $0x10] sm:$0xff] %v164
    %221 = vst [vmem:[#allocation2 + $0x18] sm:$0xff] %v167
    %222 = vst [vmem:[#allocation2 + $0x20] sm:$0xff] %v172
    %223 = vst [vmem:[#allocation2 + $0x28] sm:$0xff] %v175
    %224 = vst [vmem:[#allocation2 + $0x30] sm:$0xff] %v180
    %225 = vst [vmem:[#allocation2 + $0x38] sm:$0xff] %v183
    %226 = vst [vmem:[#allocation2 + $0x40] sm:$0xff] %v188
    %227 = vst [vmem:[#allocation2 + $0x48] sm:$0xff] %v191
    %228 = vst [vmem:[#allocation2 + $0x50] sm:$0xff] %v196
    %229 = vst [vmem:[#allocation2 + $0x58] sm:$0xff] %v199
    %230 = vst [vmem:[#allocation2 + $0x60] sm:$0xff] %v204
    %231 = vst [vmem:[#allocation2 + $0x68] sm:$0xff] %v207
    %232 = vst [vmem:[#allocation2 + $0x70] sm:$0xff] %v212
    %233 = vst [vmem:[#allocation2 + $0x78] sm:$0xff] %v215
    %v234 = vadd.f32 %v156, %v159
    %v235 = vadd.f32 %v234, %v164
    %v236 = vadd.f32 %v235, %v167
    %v237 = vadd.f32 %v236, %v172
    %v238 = vadd.f32 %v237, %v175
    %v239 = vadd.f32 %v238, %v180
    %v240 = vadd.f32 %v239, %v183
    %v241 = vadd.f32 %v240, %v188
    %v242 = vadd.f32 %v241, %v191
    %v243 = vadd.f32 %v242, %v196
    %v244 = vadd.f32 %v243, %v199
    %v245 = vadd.f32 %v244, %v204
    %v246 = vadd.f32 %v245, %v207
    %v247 = vadd.f32 %v246, %v212
    %v248 = vadd.f32 %v247, %v215
    %v249 = vrot.slane %v248, 4
    %v250 = vadd.f32 %v248, %v249
    %v251 = vrot.slane %v250, 2
    %v252 = vadd.f32 %v250, %v251
    %v253 = vrot.slane %v252, 1
    %v254 = vadd.f32 %v252, %v253
    %v255 = vmul.f32 %v156, %v156
    %v256 = vmul.f32 %v159, %v159
    %v257 = vmul.f32 %v164, %v164
    %v258 = vmul.f32 %v167, %v167
    %v259 = vmul.f32 %v172, %v172
    %v260 = vmul.f32 %v175, %v175
    %v261 = vmul.f32 %v180, %v180
    %v262 = vmul.f32 %v183, %v183
    %v263 = vmul.f32 %v188, %v188
    %v264 = vmul.f32 %v191, %v191
    %v265 = vmul.f32 %v196, %v196
    %v266 = vmul.f32 %v199, %v199
    %v267 = vmul.f32 %v204, %v204
    %v268 = vmul.f32 %v207, %v207
    %v269 = vmul.f32 %v212, %v212
    %v270 = vmul.f32 %v215, %v215
    %v271 = vadd.f32 %v255, %v256
    %v272 = vadd.f32 %v271, %v257
    %v273 = vadd.f32 %v272, %v258
    %v274 = vadd.f32 %v273, %v259
    %v275 = vadd.f32 %v274, %v260
    %v276 = vadd.f32 %v275, %v261
    %v277 = vadd.f32 %v276, %v262
    %v278 = vadd.f32 %v277, %v263
    %v279 = vadd.f32 %v278, %v264
    %v280 = vadd.f32 %v279, %v265
    %v281 = vadd.f32 %v280, %v266
    %v282 = vadd.f32 %v281, %v267
    %v283 = vadd.f32 %v282, %v268
    %v284 = vadd.f32 %v283, %v269
    %v285 = vadd.f32 %v284, %v270
    %v286 = vrot.slane %v285, 4
    %v287 = vadd.f32 %v285, %v286
    %v288 = vrot.slane %v287, 2
    %v289 = vadd.f32 %v287, %v288
    %v290 = vrot.slane %v289, 1
    %v291 = vadd.f32 %v289, %v290
    %v292 = vlaneseq
    %v293 = vshrl.u32 %v292, 7
    %vm294 = vcmp.eq.s32.totalorder %v293, 0
    %v295 = vsel %vm294, %v254, 0.0
    %vm296 = vcmp.eq.s32.totalorder %v293, 1
    %v297 = vsel %vm296, %v291, 0.0
    %v298 = vadd.f32 %v295, %v297
    %299 = vst [vmem:[#allocation4] sm:$0xff] %v298
    // Predicated region
    $region10: #{tpu_custom_call.1} parent=1 // pred_check
      _
    $region11: #{tpu_custom_call.1} parent=1 // pred_check_branch
      %301 = sbr.rel (0) target = $region13
    $region12: #{tpu_custom_call.1} parent=1 // pred_region
      %s303 = ssub.s32 2048, 2048
      %304 = vsyncadd [#allocation3], %s303
      %s305 = sshll.u32 [#allocation2], 4
      %s306 = int_to_ptr.vmem [resolvable:$true] %s305
      %311 = dma.vmem_to_hbm [thread:$0]  %s306, 2048, %s2, [#allocation3], 128, 128, 8
    $region13: #{tpu_custom_call.1} parent=1 // pred_fallthru
      _
    // Predicated region
    $region14: #{tpu_custom_call.1} parent=1 // pred_check
      _
    $region15: #{tpu_custom_call.1} parent=1 // pred_check_branch
      %313 = sbr.rel (0) target = $region17
    $region16: #{tpu_custom_call.1} parent=1 // pred_region
      %s315 = ssub.s32 128, 128
      %316 = vsyncadd [#allocation5], %s315
      %s318 = sshll.u32 [#allocation4], 4
      %s319 = int_to_ptr.vmem [resolvable:$true] %s318
      %321 = dma.vmem_to_hbm [thread:$0]  %s319, 128, %s3, [#allocation5]
    $region17: #{tpu_custom_call.1} parent=1 // pred_fallthru
      _
    // Predicated region
    $region18: #{tpu_custom_call.1} parent=1 // pred_check
      _
    $region19: #{tpu_custom_call.1} parent=1 // pred_check_branch
      %323 = sbr.rel (0) target = $region21
    $region20: #{tpu_custom_call.1} parent=1 // pred_region
      %324 = dma.done [#allocation3], 2048
    $region21: #{tpu_custom_call.1} parent=1 // pred_fallthru
      _
    // Predicated region
    $region22: #{tpu_custom_call.1} parent=1 // pred_check
      _
    $region23: #{tpu_custom_call.1} parent=1 // pred_check_branch
      %326 = sbr.rel (0) target = $region25
    $region24: #{tpu_custom_call.1} parent=1 // pred_region
      %327 = dma.done [#allocation5], 128
    $region25: #{tpu_custom_call.1} parent=1 // pred_fallthru
      _
    %328 = vsyncpa [#allocation3], 1
    %329 = vsyncpa [#allocation5], 1

</llo_original>
